<compile_context>
chip_gen: v7x
topology: tpu7x:2x2x1
jax: 0.10.0
libtpu: 0.0.40
codegen_flags: <defaults>
</compile_context>

<pallas_src>
import jax
import jax.numpy as jnp
from jax.experimental import pallas as pl
from jax.experimental.pallas import tpu as pltpu

_LANE = 128


def _round_up(x: int, m: int) -> int:
    return ((x + m - 1) // m) * m


def _make_qnet_kernel(num_hidden_layers: int):
    """Fused MLP kernel: hidden Linear+ReLU layers on the MXU (bf16 operands,
    f32 accumulation), final 1-unit Linear as a VPU multiply + XLU lane-reduce
    (f32), writing a narrow [tb, 1] result."""

    def kernel(*refs):
        # refs = (xin, w0, b0, w1, b1, ..., w_out_row, b_out, out)
        xin_ref = refs[0]
        param_refs = refs[1:-1]
        out_ref = refs[-1]

        x = xin_ref[...]  # bf16 [tb, in_dim]
        for i in range(num_hidden_layers):
            w = param_refs[2 * i][...]        # bf16 [in_pad, out_pad]
            b = param_refs[2 * i + 1][...]    # f32  [1, out_pad]
            x = jnp.dot(x, w, preferred_element_type=jnp.float32) + b
            x = jnp.maximum(x, 0.0)           # f32; padded lanes stay 0
            if i + 1 < num_hidden_layers:
                x = x.astype(jnp.bfloat16)    # next matmul operand

        # Output layer (1 unit): VPU multiply + XLU lane-reduce, all f32.
        w_out = param_refs[-2][...]           # f32 [1, h_pad]
        b_out = param_refs[-1][...]           # f32 [1, 1]
        y = jnp.sum(x * w_out, axis=-1, keepdims=True) + b_out
        out_ref[...] = y.astype(out_ref.dtype)

    return kernel


def _prep_params(params):
    """Lane-pad hidden-layer outputs to multiples of 128, cast hidden weights
    to bf16 (biases stay f32), and turn the 1-unit output layer into an f32
    row vector [1, h_pad] plus a [1, 1] bias.  Padded columns/biases are zero
    so padded lanes stay exactly 0 through ReLU and contribute nothing."""
    hidden, (w_out, b_out) = params[:-1], params[-1]
    prepped = []
    prev_out_pad = None
    for li, (w, b) in enumerate(hidden):
        fan_in, fan_out = w.shape
        in_pad = fan_in if li == 0 else prev_out_pad
        out_pad = _round_up(fan_out, _LANE)
        w_p = jnp.zeros((in_pad, out_pad), jnp.float32).at[:fan_in, :fan_out].set(w)
        b_p = jnp.zeros((1, out_pad), jnp.float32).at[:, :fan_out].set(
            b.reshape(1, -1)
        )
        prepped.append(w_p.astype(jnp.bfloat16))
        prepped.append(b_p)
        prev_out_pad = out_pad
    h_pad = prev_out_pad
    w_row = jnp.zeros((1, h_pad), jnp.float32).at[0, : w_out.shape[0]].set(w_out[:, 0])
    prepped.append(w_row)
    prepped.append(jnp.asarray(b_out, jnp.float32).reshape(1, 1))
    return prepped


def _choose_tile_b(B: int, tile_b: int) -> int:
    """Pick a batch tile (multiple of 8).  Keep grid >= 2 when the batch
    allows (v7x has 2 TensorCores) and prefer a tile that divides B exactly
    so no wrapper-side jnp.pad copy is needed."""
    b8 = _round_up(B, 8)
    if b8 <= 16:
        return b8
    cap = max(8, min(tile_b, (b8 // 2 // 8) * 8))  # grid >= 2
    if B % 8 == 0:
        for t in range(cap, 7, -8):
            if B % t == 0:
                return t
    return cap


def qnetwork_forward(state, actions, params, *, tile_b=2048):
    """Pallas-backed forward pass.

    Args:
      state:   [B, state_size]  float32
      actions: [B, action_size] float32
      params:  list of (W, b); W is [in, out], b is [1, out] (last pair is the
               1-unit output layer).
      tile_b:  target batch tile (multiple of 8) for large-batch streaming.
    Returns:
      q values [B, 1] float32.
    """
    B = state.shape[0]
    num_hidden = len(params) - 1

    # ---- wrapper-side prep ----
    # Single concat of state||actions (tiny: ~24 B/row as bf16) so the first
    # layer is one MXU matmul; cast to bf16 to halve input HBM bytes.
    xin = jnp.concatenate([state, actions], axis=1).astype(jnp.bfloat16)
    in_dim = xin.shape[1]
    flat_params = _prep_params(params)

    # ---- batch tiling ----
    tb = _choose_tile_b(B, tile_b)
    B_pad = _round_up(B, tb)
    if B_pad != B:
        xin = jnp.pad(xin, ((0, B_pad - B), (0, 0)))
    grid = (B_pad // tb,)

    kernel = _make_qnet_kernel(num_hidden)

    # Streamed per-batch-tile input; weights/biases use constant index_maps so
    # they stay resident in VMEM across the batch grid.
    in_specs = [pl.BlockSpec((tb, in_dim), lambda i: (i, 0))]
    in_specs += [pl.BlockSpec(p.shape, lambda i: (0, 0)) for p in flat_params]
    # Narrow output: block last dim == full array dim (1) -> legal; HBM
    # writeback is 4 B/row instead of 512 B/row.
    out_spec = pl.BlockSpec((tb, 1), lambda i: (i, 0))

    # Cost hint for XLA scheduling.
    flops = 0
    prev = in_dim
    for w, _ in zip(flat_params[0::2], flat_params[1::2]):
        flops += 2 * B_pad * w.shape[0] * w.shape[1]
        prev = w.shape[1]
    bytes_accessed = int(
        xin.size * xin.dtype.itemsize
        + B_pad * 4
        + sum(int(p.size) * p.dtype.itemsize for p in flat_params)
    )
    cost = pl.CostEstimate(
        flops=int(flops), transcendentals=0, bytes_accessed=bytes_accessed
    )

    out = pl.pallas_call(
        kernel,
        out_shape=jax.ShapeDtypeStruct((B_pad, 1), jnp.float32),
        grid=grid,
        in_specs=in_specs,
        out_specs=out_spec,
        compiler_params=pltpu.CompilerParams(
            dimension_semantics=("parallel",),
            vmem_limit_bytes=32 * 1024 * 1024,
        ),
        cost_estimate=cost,
    )(xin, *flat_params)

    return out[:B]


def init_qnetwork_params(key, state_size, action_size, hidden_layers):
    """Deterministic init mimicking PyTorch nn.Linear default
    (uniform(-1/sqrt(fan_in), 1/sqrt(fan_in))). Weights stored as [in, out]."""
    sizes_in = [state_size + action_size] + list(hidden_layers)
    sizes_out = list(hidden_layers) + [1]
    params = []
    for fan_in, fan_out in zip(sizes_in, sizes_out):
        key, kw, kb = jax.random.split(key, 3)
        bound = 1.0 / jnp.sqrt(jnp.float32(fan_in))
        w = jax.random.uniform(kw, (fan_in, fan_out), jnp.float32, -bound, bound)
        b = jax.random.uniform(kb, (1, fan_out), jnp.float32, -bound, bound)
        params.append((w, b))
    return params


def qnetwork_reference(state, actions, params):
    """Pure-JAX f32 reference (matches the PyTorch module semantics)."""
    x = jnp.concatenate([state, actions], axis=1)
    for w, b in params[:-1]:
        x = jnp.maximum(x @ w + b, 0.0)
    w, b = params[-1]
    return x @ w + b


def qnetwork_reference_bf16(state, actions, params):
    """Reference mimicking the kernel's bf16 matmul operands / f32 accumulate."""
    x = jnp.concatenate([state, actions], axis=1)
    for w, b in params[:-1]:
        x = jnp.dot(
            x.astype(jnp.bfloat16),
            w.astype(jnp.bfloat16),
            preferred_element_type=jnp.float32,
        ) + b
        x = jnp.maximum(x, 0.0)
    w, b = params[-1]
    return x @ w + b  # final layer in f32, like the kernel


if __name__ == "__main__":
    # Small shapes consistent with the module's forward:
    B, STATE_SIZE, ACTION_SIZE = 2, 8, 4
    HIDDEN_LAYERS = [32, 32]

    key = jax.random.PRNGKey(0)
    key, ks, ka, kp = jax.random.split(key, 4)
    state = jax.random.normal(ks, (B, STATE_SIZE), jnp.float32)
    actions = jax.random.normal(ka, (B, ACTION_SIZE), jnp.float32)
    params = init_qnetwork_params(kp, STATE_SIZE, ACTION_SIZE, HIDDEN_LAYERS)

    q = qnetwork_forward(state, actions, params)
    q = jax.block_until_ready(q)

    q_ref_bf16 = qnetwork_reference_bf16(state, actions, params)
    q_ref_f32 = qnetwork_reference(state, actions, params)
    assert q.shape == (B, 1), q.shape
    # Tight check against the bf16-matmul reference, loose check against f32.
    assert jnp.allclose(q, q_ref_bf16, atol=5e-3, rtol=5e-3), (q, q_ref_bf16)
    assert jnp.allclose(q, q_ref_f32, atol=5e-2, rtol=5e-2), (q, q_ref_f32)

    print("KERNEL_OK")
</pallas_src>

<mosaic_0001>
module attributes {stable_mosaic.version = 11 : i64} {
  func.func @kernel(%arg0: i32, %arg1: memref<8x12xbf16, #tpu.memory_space<vmem>>, %arg2: memref<12x128xbf16, #tpu.memory_space<vmem>>, %arg3: memref<1x128xf32, #tpu.memory_space<vmem>>, %arg4: memref<128x128xbf16, #tpu.memory_space<vmem>>, %arg5: memref<1x128xf32, #tpu.memory_space<vmem>>, %arg6: memref<1x128xf32, #tpu.memory_space<vmem>>, %arg7: memref<1x1xf32, #tpu.memory_space<vmem>>, %arg8: memref<8x1xf32, #tpu.memory_space<vmem>>) attributes {dimension_semantics = [#tpu.dimension_semantics<parallel>], iteration_bounds = array<i64: 1>, scalar_prefetch = 0 : i64, scratch_operands = 0 : i64, tpu.core_type = #tpu.core_type<tc>, window_params = [{transform_indices = @transform_0, window_bounds = array<i64: 8, 12>}, {pipeline_mode = #tpu.pipeline_mode<synchronous>, transform_indices = @transform_1, window_bounds = array<i64: 12, 128>}, {pipeline_mode = #tpu.pipeline_mode<synchronous>, transform_indices = @transform_2, window_bounds = array<i64: 1, 128>}, {pipeline_mode = #tpu.pipeline_mode<synchronous>, transform_indices = @transform_3, window_bounds = array<i64: 128, 128>}, {pipeline_mode = #tpu.pipeline_mode<synchronous>, transform_indices = @transform_4, window_bounds = array<i64: 1, 128>}, {pipeline_mode = #tpu.pipeline_mode<synchronous>, transform_indices = @transform_5, window_bounds = array<i64: 1, 128>}, {pipeline_mode = #tpu.pipeline_mode<synchronous>, transform_indices = @transform_6, window_bounds = array<i64: 1, 1>}, {transform_indices = @transform_7, window_bounds = array<i64: 8, 1>}]} {
    %c0 = arith.constant 0 : index
    %c0_0 = arith.constant 0 : index
    %0 = vector.load %arg1[%c0, %c0_0] : memref<8x12xbf16, #tpu.memory_space<vmem>>, vector<8x12xbf16>
    %c0_1 = arith.constant 0 : index
    %c0_2 = arith.constant 0 : index
    %1 = vector.load %arg2[%c0_1, %c0_2] : memref<12x128xbf16, #tpu.memory_space<vmem>>, vector<12x128xbf16>
    %c0_3 = arith.constant 0 : index
    %c0_4 = arith.constant 0 : index
    %2 = vector.load %arg3[%c0_3, %c0_4] : memref<1x128xf32, #tpu.memory_space<vmem>>, vector<1x128xf32>
    %cst = arith.constant dense<0.000000e+00> : vector<8x128xf32>
    %3 = tpu.matmul %0, %1, %cst {dimension_numbers = #tpu.dot_dimension_numbers<[1], [0], [0], [1], [0, 0, 1, 1], [], []>} : vector<8x12xbf16>, vector<12x128xbf16>, vector<8x128xf32> -> vector<8x128xf32>
    %4 = vector.broadcast %2 : vector<1x128xf32> to vector<8x128xf32>
    %5 = arith.addf %3, %4 : vector<8x128xf32>
    %cst_5 = arith.constant 0.000000e+00 : f32
    %6 = vector.broadcast %cst_5 : f32 to vector<8x128xf32>
    %7 = arith.maximumf %5, %6 : vector<8x128xf32>
    %8 = arith.truncf %7 : vector<8x128xf32> to vector<8x128xbf16>
    %c0_6 = arith.constant 0 : index
    %c0_7 = arith.constant 0 : index
    %9 = vector.load %arg4[%c0_6, %c0_7] : memref<128x128xbf16, #tpu.memory_space<vmem>>, vector<128x128xbf16>
    %c0_8 = arith.constant 0 : index
    %c0_9 = arith.constant 0 : index
    %10 = vector.load %arg5[%c0_8, %c0_9] : memref<1x128xf32, #tpu.memory_space<vmem>>, vector<1x128xf32>
    %cst_10 = arith.constant dense<0.000000e+00> : vector<8x128xf32>
    %11 = tpu.matmul %8, %9, %cst_10 {dimension_numbers = #tpu.dot_dimension_numbers<[1], [0], [0], [1], [0, 0, 1, 1], [], []>} : vector<8x128xbf16>, vector<128x128xbf16>, vector<8x128xf32> -> vector<8x128xf32>
    %12 = vector.broadcast %10 : vector<1x128xf32> to vector<8x128xf32>
    %13 = arith.addf %11, %12 : vector<8x128xf32>
    %cst_11 = arith.constant 0.000000e+00 : f32
    %14 = vector.broadcast %cst_11 : f32 to vector<8x128xf32>
    %15 = arith.maximumf %13, %14 : vector<8x128xf32>
    %c0_12 = arith.constant 0 : index
    %c0_13 = arith.constant 0 : index
    %16 = vector.load %arg6[%c0_12, %c0_13] : memref<1x128xf32, #tpu.memory_space<vmem>>, vector<1x128xf32>
    %c0_14 = arith.constant 0 : index
    %c0_15 = arith.constant 0 : index
    %17 = vector.load %arg7[%c0_14, %c0_15] : memref<1x1xf32, #tpu.memory_space<vmem>>, vector<1x1xf32>
    %18 = vector.broadcast %16 : vector<1x128xf32> to vector<8x128xf32>
    %19 = arith.mulf %15, %18 : vector<8x128xf32>
    %cst_16 = arith.constant dense<0.000000e+00> : vector<8xf32>
    %20 = vector.multi_reduction <add>, %19, %cst_16 [1] : vector<8x128xf32> to vector<8xf32>
    %21 = vector.shape_cast %20 : vector<8xf32> to vector<8x1xf32>
    %22 = vector.broadcast %17 : vector<1x1xf32> to vector<8x1xf32>
    %23 = arith.addf %21, %22 : vector<8x1xf32>
    %c0_17 = arith.constant 0 : index
    %c0_18 = arith.constant 0 : index
    %24 = vector.load %arg8[%c0_17, %c0_18] : memref<8x1xf32, #tpu.memory_space<vmem>>, vector<8x1xf32>
    tpu.vector_store %arg8[%c0_17, %c0_18], %23 {strides = array<i32>} : memref<8x1xf32, #tpu.memory_space<vmem>>, vector<8x1xf32>,
    return
  }
  func.func @transform_0(%arg0: i32) -> (i32, i32) {
    %c0_i32 = arith.constant 0 : i32
    %c0_i32_0 = arith.constant 0 : i32
    return %arg0, %c0_i32 : i32, i32
  }
  func.func @transform_1(%arg0: i32) -> (i32, i32) {
    %c0_i32 = arith.constant 0 : i32
    %c0_i32_0 = arith.constant 0 : i32
    %c0_i32_1 = arith.constant 0 : i32
    return %c0_i32, %c0_i32_0 : i32, i32
  }
  func.func @transform_2(%arg0: i32) -> (i32, i32) {
    %c0_i32 = arith.constant 0 : i32
    %c0_i32_0 = arith.constant 0 : i32
    %c0_i32_1 = arith.constant 0 : i32
    return %c0_i32, %c0_i32_0 : i32, i32
  }
  func.func @transform_3(%arg0: i32) -> (i32, i32) {
    %c0_i32 = arith.constant 0 : i32
    %c0_i32_0 = arith.constant 0 : i32
    %c0_i32_1 = arith.constant 0 : i32
    return %c0_i32, %c0_i32_0 : i32, i32
  }
  func.func @transform_4(%arg0: i32) -> (i32, i32) {
    %c0_i32 = arith.constant 0 : i32
    %c0_i32_0 = arith.constant 0 : i32
    %c0_i32_1 = arith.constant 0 : i32
    return %c0_i32, %c0_i32_0 : i32, i32
  }
  func.func @transform_5(%arg0: i32) -> (i32, i32) {
    %c0_i32 = arith.constant 0 : i32
    %c0_i32_0 = arith.constant 0 : i32
    %c0_i32_1 = arith.constant 0 : i32
    return %c0_i32, %c0_i32_0 : i32, i32
  }
  func.func @transform_6(%arg0: i32) -> (i32, i32) {
    %c0_i32 = arith.constant 0 : i32
    %c0_i32_0 = arith.constant 0 : i32
    %c0_i32_1 = arith.constant 0 : i32
    return %c0_i32, %c0_i32_0 : i32, i32
  }
  func.func @transform_7(%arg0: i32) -> (i32, i32) {
    %c0_i32 = arith.constant 0 : i32
    %c0_i32_0 = arith.constant 0 : i32
    return %arg0, %c0_i32 : i32, i32
  }
}

</mosaic_0001>

<llo_original>
// kernel: tpu_custom_call.1
$region0: #{tpu_custom_call.1}
  #allocation0 [shape = 'u32[]', space=smem, size = 0x4, offset = 0x4, fixed_abs, tag = 'smem constant byte address 0x4 - core index']
  #allocation1 [shape = 'u32[144,128]{1,0:T(1,128)}', space=vmem, size = 0x12000, scoped, tag = 'internal scratch']
  #allocation2 [shape = 'f32[1,1]{1,0:T(1,128)S(1)}', space=vmem, size = 0x200, scoped, tag = 'scoped memory for tpu_custom_call.1']
  %s0 = inlined_call_operand.hbm [shape: bf16[8,12], index: 0, kind: input, shape index: {}]
  %s1 = inlined_call_operand.hbm [shape: bf16[12,128], index: 1, kind: input, shape index: {}]
  %s2 = inlined_call_operand.vmem [shape: f32[1,128], index: 2, kind: input, shape index: {}]
  %s3 = inlined_call_operand.hbm [shape: bf16[128,128], index: 3, kind: input, shape index: {}]
  %s4 = inlined_call_operand.vmem [shape: f32[1,128], index: 4, kind: input, shape index: {}]
  %s5 = inlined_call_operand.vmem [shape: f32[1,128], index: 5, kind: input, shape index: {}]
  %s6 = inlined_call_operand.<no memory space> [shape: f32[1,1], index: 6, kind: input, shape index: {}]
  %s7 = inlined_call_operand.vmem [shape: f32[8,1], index: 7, kind: output, shape index: {}]
  %s8 = sld [smem:[#allocation0]]
  $region50: #{tpu_custom_call.1} parent=0
    _
  %s10 = ssub.s32 1, %s8
  %s11 = scalar_select 0, %s10, %s8
  %v12 = vstv %s6
  %13 = vst [vmem:[#allocation2] sm:$0x1] %v12
  $region1: #{tpu_custom_call.1} parent=0
    #allocation3 [shape = 'u8[2048]{0}', space=vmem, size = 0x800, scoped, tag = 'input window, operand 0, single buffered']
    #allocation4 [shape = 's32[1]{0}', space=sflag, size = 0x4, scoped, tag = 'scoped memory for tpu_custom_call.1']
    #allocation5 [shape = 'u8[4096]{0}', space=vmem, size = 0x1000, scoped, tag = 'input window, operand 1, single buffered']
    #allocation6 [shape = 's32[1]{0}', space=sflag, size = 0x4, scoped, tag = 'scoped memory for tpu_custom_call.1']
    #allocation7 [shape = 'u8[32768]{0}', space=vmem, size = 0x8000, scoped, tag = 'input window, operand 3, single buffered']
    %14 = vsyncpa [#allocation4], 0
    %15 = vsyncpa [#allocation6], 0
    // Predicated region
    $region2: #{tpu_custom_call.1} parent=1 // pred_check
      _
    $region3: #{tpu_custom_call.1} parent=1 // pred_check_branch
      %17 = sbr.rel (0) target = $region5
    $region4: #{tpu_custom_call.1} parent=1 // pred_region
      %s19 = ssub.s32 64, 64
      %20 = vsyncadd [#allocation4], %s19
      %s22 = sshll.u32 [#allocation3], 4
      %s23 = int_to_ptr.vmem [resolvable:$true] %s22
      %25 = dma.hbm_to_vmem [thread:$0]  %s0, 64, %s23, [#allocation4]
    $region5: #{tpu_custom_call.1} parent=1 // pred_fallthru
      _
    // Predicated region
    $region6: #{tpu_custom_call.1} parent=1 // pred_check
      _
    $region7: #{tpu_custom_call.1} parent=1 // pred_check_branch
      %27 = sbr.rel (0) target = $region9
    $region8: #{tpu_custom_call.1} parent=1 // pred_region
      %s29 = ssub.s32 128, 128
      %30 = vsyncadd [#allocation6], %s29
      %s31 = sshll.u32 [#allocation5], 4
      %s32 = int_to_ptr.vmem [resolvable:$true] %s31
      %37 = dma.hbm_to_vmem [thread:$0]  %s1, 128, %s32, [#allocation6], 64, 64, 4
    $region9: #{tpu_custom_call.1} parent=1 // pred_fallthru
      _
    // Predicated region
    $region10: #{tpu_custom_call.1} parent=1 // pred_check
      _
    $region11: #{tpu_custom_call.1} parent=1 // pred_check_branch
      %39 = sbr.rel (0) target = $region13
    $region12: #{tpu_custom_call.1} parent=1 // pred_region
      _
    $region13: #{tpu_custom_call.1} parent=1 // pred_fallthru
      _
    // Predicated region
    $region14: #{tpu_custom_call.1} parent=1 // pred_check
      _
    $region15: #{tpu_custom_call.1} parent=1 // pred_check_branch
      %41 = sbr.rel (0) target = $region17
    $region16: #{tpu_custom_call.1} parent=1 // pred_region
      %s43 = ssub.s32 1024, 1024
      %44 = vsyncadd [#allocation6], %s43
      %s45 = sshll.u32 [#allocation7], 4
      %s46 = int_to_ptr.vmem [resolvable:$true] %s45
      %51 = dma.hbm_to_vmem [thread:$0]  %s3, 1024, %s46, [#allocation6], 64, 64, 4
    $region17: #{tpu_custom_call.1} parent=1 // pred_fallthru
      _
    // Predicated region
    $region18: #{tpu_custom_call.1} parent=1 // pred_check
      _
    $region19: #{tpu_custom_call.1} parent=1 // pred_check_branch
      %53 = sbr.rel (0) target = $region21
    $region20: #{tpu_custom_call.1} parent=1 // pred_region
      _
    $region21: #{tpu_custom_call.1} parent=1 // pred_fallthru
      _
    // Predicated region
    $region22: #{tpu_custom_call.1} parent=1 // pred_check
      _
    $region23: #{tpu_custom_call.1} parent=1 // pred_check_branch
      %55 = sbr.rel (0) target = $region25
    $region24: #{tpu_custom_call.1} parent=1 // pred_region
      _
    $region25: #{tpu_custom_call.1} parent=1 // pred_fallthru
      _
    // Predicated region
    $region26: #{tpu_custom_call.1} parent=1 // pred_check
      _
    $region27: #{tpu_custom_call.1} parent=1 // pred_check_branch
      %57 = sbr.rel (0) target = $region29
    $region28: #{tpu_custom_call.1} parent=1 // pred_region
      _
    $region29: #{tpu_custom_call.1} parent=1 // pred_fallthru
      _
    // Predicated region
    $region30: #{tpu_custom_call.1} parent=1 // pred_check
      _
    $region31: #{tpu_custom_call.1} parent=1 // pred_check_branch
      %59 = sbr.rel (0) target = $region33
    $region32: #{tpu_custom_call.1} parent=1 // pred_region
      %60 = dma.done [#allocation4], 64
    $region33: #{tpu_custom_call.1} parent=1 // pred_fallthru
      _
    // Predicated region
    $region34: #{tpu_custom_call.1} parent=1 // pred_check
      _
    $region35: #{tpu_custom_call.1} parent=1 // pred_check_branch
      %62 = sbr.rel (0) target = $region37
    $region36: #{tpu_custom_call.1} parent=1 // pred_region
      %63 = dma.done [#allocation6], 128
    $region37: #{tpu_custom_call.1} parent=1 // pred_fallthru
      _
    // Predicated region
    $region38: #{tpu_custom_call.1} parent=1 // pred_check
      _
    $region39: #{tpu_custom_call.1} parent=1 // pred_check_branch
      %65 = sbr.rel (0) target = $region41
    $region40: #{tpu_custom_call.1} parent=1 // pred_region
      %66 = dma.done [#allocation6], 1024
    $region41: #{tpu_custom_call.1} parent=1 // pred_fallthru
      _
    %v68 = vld [vmem:[#allocation3] sm:$0xf]
    %v69 = vld [vmem:[#allocation5] sm:$0xf]
    %v70 = vld [vmem:[#allocation5 + $0x4] sm:$0x3]
    %v71 = vld [vmem:[%s2] sm:$0x1]
    %v73 = vlaneseq
    %v74 = vshrl.u32 %v73, 7
    %v75 = vsub.s32 0, %v74
    %v76 = vrot.slane %v71, %v75
    %v80 = vunpack.c.l.b16 %v69
    %v81 = vunpack.c.l.b16 %v70
    %v82 = vpack.c.b16 %v81, %v80
    %vm83 = vcmask 97280
    %v85 = vsel %vm83, %v68, 0
    %vm87 = vcmask 1045504
    %v89 = vsel %vm87, %v82, 0
    %91 = vmatprep.subr.bf16.mxu0 0
    %92 = vmatpush1.bf16.msra.mxu0 %v89
    %93 = vmatprep.subr.bf16.mxu0 0
    %94 = vmatpush1.bf16.msra.mxu0 0
    %95 = vmatprep.subr.bf16.mxu0 0
    %96 = vmatpush1.bf16.msra.mxu0 0
    %97 = vmatprep.subr.bf16.mxu0 0
    %98 = vmatpush1.bf16.msra.mxu0 0
    %99 = vmatprep.subr.bf16.mxu0 0
    %100 = vmatpush1.bf16.msra.mxu0 0
    %101 = vmatprep.subr.bf16.mxu0 0
    %102 = vmatpush1.bf16.msra.mxu0 0
    %103 = vmatprep.subr.bf16.mxu0 0
    %104 = vmatpush1.bf16.msra.mxu0 0
    %105 = vmatprep.subr.bf16.mxu0 0
    %106 = vmatpush1.bf16.msra.mxu0 0
    %107 = vmatprep.subr.bf16.mxu0 0
    %108 = vmatpush1.bf16.msra.mxu0 0
    %109 = vmatprep.subr.bf16.mxu0 0
    %110 = vmatpush1.bf16.msra.mxu0 0
    %111 = vmatprep.subr.bf16.mxu0 0
    %112 = vmatpush1.bf16.msra.mxu0 0
    %113 = vmatprep.subr.bf16.mxu0 0
    %114 = vmatpush1.bf16.msra.mxu0 0
    %115 = vmatprep.subr.bf16.mxu0 0
    %116 = vmatpush1.bf16.msra.mxu0 0
    %117 = vmatprep.subr.bf16.mxu0 0
    %118 = vmatpush1.bf16.msra.mxu0 0
    %119 = vmatprep.subr.bf16.mxu0 0
    %120 = vmatpush1.bf16.msra.mxu0 0
    %121 = vmatprep.subr.bf16.mxu0 0
    %122 = vmatpush1.bf16.msra.mxu0 0
    %123 = vmatprep.mubr.bf16.mxu0 0
    %124 = vmatmul.mubr.bf16.gmra.mrb[0].mxu0 %v85
    %v125 = vpop.f32.mrb[0].mxu0
    %v126 = vadd.f32 %v76, %v125
    %v127 = vpop.f32.mrb[0].mxu0
    %v128 = vpop.f32.mrb[0].mxu0
    %v129 = vpop.f32.mrb[0].mxu0
    %130 = vdwg.mxu0
    %v131 = vmax.f32 %v126, 0.0
    %v132 = vpack.c.bf16 %v131, %v131
    %v133 = vld [vmem:[#allocation7] sm:$0xf]
    %v134 = vld [vmem:[#allocation7 + $0x4] sm:$0xf]
    %v135 = vld [vmem:[#allocation7 + $0x8] sm:$0xf]
    %v136 = vld [vmem:[#allocation7 + $0xc] sm:$0xf]
    %v137 = vld [vmem:[#allocation7 + $0x10] sm:$0xf]
    %v138 = vld [vmem:[#allocation7 + $0x14] sm:$0xf]
    %v139 = vld [vmem:[#allocation7 + $0x18] sm:$0xf]
    %v140 = vld [vmem:[#allocation7 + $0x1c] sm:$0xf]
    %v141 = vld [vmem:[#allocation7 + $0x20] sm:$0xf]
    %v142 = vld [vmem:[#allocation7 + $0x24] sm:$0xf]
    %v143 = vld [vmem:[#allocation7 + $0x28] sm:$0xf]
    %v144 = vld [vmem:[#allocation7 + $0x2c] sm:$0xf]
    %v145 = vld [vmem:[#allocation7 + $0x30] sm:$0xf]
    %v146 = vld [vmem:[#allocation7 + $0x34] sm:$0xf]
    %v147 = vld [vmem:[#allocation7 + $0x38] sm:$0xf]
    %v148 = vld [vmem:[#allocation7 + $0x3c] sm:$0xf]
    %v149 = vld [vmem:[%s4] sm:$0x1]
    %v151 = vlaneseq
    %v152 = vshrl.u32 %v151, 7
    %v153 = vsub.s32 0, %v152
    %v154 = vrot.slane %v149, %v153
    %v172 = vunpack.c.l.b16 %v133
    %v173 = vunpack.c.l.b16 %v134
    %v174 = vunpack.c.l.b16 %v135
    %v175 = vunpack.c.l.b16 %v136
    %v176 = vunpack.c.l.b16 %v137
    %v177 = vunpack.c.l.b16 %v138
    %v178 = vunpack.c.l.b16 %v139
    %v179 = vunpack.c.l.b16 %v140
    %v180 = vunpack.c.l.b16 %v141
    %v181 = vunpack.c.l.b16 %v142
    %v182 = vunpack.c.l.b16 %v143
    %v183 = vunpack.c.l.b16 %v144
    %v184 = vunpack.c.l.b16 %v145
    %v185 = vunpack.c.l.b16 %v146
    %v186 = vunpack.c.l.b16 %v147
    %v187 = vunpack.c.l.b16 %v148
    %v188 = vpack.c.b16 %v173, %v172
    %v189 = vpack.c.b16 %v175, %v174
    %v190 = vpack.c.b16 %v177, %v176
    %v191 = vpack.c.b16 %v179, %v178
    %v192 = vpack.c.b16 %v181, %v180
    %v193 = vpack.c.b16 %v183, %v182
    %v194 = vpack.c.b16 %v185, %v184
    %v195 = vpack.c.b16 %v187, %v186
    %204 = vmatprep.subr.bf16.mxu0 0
    %205 = vmatpush1.bf16.msra.mxu0 %v188
    %206 = vmatprep.subr.bf16.mxu0 0
    %207 = vmatpush1.bf16.msra.mxu0 %v189
    %208 = vmatprep.subr.bf16.mxu0 0
    %209 = vmatpush1.bf16.msra.mxu0 %v190
    %210 = vmatprep.subr.bf16.mxu0 0
    %211 = vmatpush1.bf16.msra.mxu0 %v191
    %212 = vmatprep.subr.bf16.mxu0 0
    %213 = vmatpush1.bf16.msra.mxu0 %v192
    %214 = vmatprep.subr.bf16.mxu0 0
    %215 = vmatpush1.bf16.msra.mxu0 %v193
    %216 = vmatprep.subr.bf16.mxu0 0
    %217 = vmatpush1.bf16.msra.mxu0 %v194
    %218 = vmatprep.subr.bf16.mxu0 0
    %219 = vmatpush1.bf16.msra.mxu0 %v195
    %220 = vmatprep.subr.bf16.mxu0 0
    %221 = vmatpush1.bf16.msra.mxu0 0
    %222 = vmatprep.subr.bf16.mxu0 0
    %223 = vmatpush1.bf16.msra.mxu0 0
    %224 = vmatprep.subr.bf16.mxu0 0
    %225 = vmatpush1.bf16.msra.mxu0 0
    %226 = vmatprep.subr.bf16.mxu0 0
    %227 = vmatpush1.bf16.msra.mxu0 0
    %228 = vmatprep.subr.bf16.mxu0 0
    %229 = vmatpush1.bf16.msra.mxu0 0
    %230 = vmatprep.subr.bf16.mxu0 0
    %231 = vmatpush1.bf16.msra.mxu0 0
    %232 = vmatprep.subr.bf16.mxu0 0
    %233 = vmatpush1.bf16.msra.mxu0 0
    %234 = vmatprep.subr.bf16.mxu0 0
    %235 = vmatpush1.bf16.msra.mxu0 0
    %236 = vmatprep.mubr.bf16.mxu0 0
    %237 = vmatmul.mubr.bf16.gmra.mrb[0].mxu0 %v132
    %v238 = vpop.f32.mrb[0].mxu0
    %v239 = vadd.f32 %v154, %v238
    %v240 = vpop.f32.mrb[0].mxu0
    %v241 = vpop.f32.mrb[0].mxu0
    %v242 = vpop.f32.mrb[0].mxu0
    %243 = vdwg.mxu0
    %v244 = vmax.f32 %v239, 0.0
    %v245 = vld [vmem:[%s5] sm:$0x1]
    %v246 = vld [vmem:[#allocation2] sm:$0x1]
    %v248 = vlaneseq
    %v249 = vshrl.u32 %v248, 7
    %v250 = vsub.s32 0, %v249
    %v251 = vrot.slane %v245, %v250
    %v253 = vmul.f32 %v244, %v251
    %254 = vadd.xlane.f32.xlu0 %v253
    %v255 = vpop.xlane.xlu0 %254
    %v257 = vlaneseq
    %v258 = vshrl.u32 %v257, 7
    %v259 = vsub.s32 0, %v258
    %v260 = vrot.slane %v246, %v259
    %v262 = vadd.f32 %v255, %v260
    %vm263 = vcmask 7168
    %264 = vst.msk [vmem:[%s7] sm:$0xff] %vm263, %v262
    // Predicated region
    $region42: #{tpu_custom_call.1} parent=1 // pred_check
      _
    $region43: #{tpu_custom_call.1} parent=1 // pred_check_branch
      %266 = sbr.rel (0) target = $region45
    $region44: #{tpu_custom_call.1} parent=1 // pred_region
      _
    $region45: #{tpu_custom_call.1} parent=1 // pred_fallthru
      _
    // Predicated region
    $region46: #{tpu_custom_call.1} parent=1 // pred_check
      _
    $region47: #{tpu_custom_call.1} parent=1 // pred_check_branch
      %268 = sbr.rel (0) target = $region49
    $region48: #{tpu_custom_call.1} parent=1 // pred_region
      _
    $region49: #{tpu_custom_call.1} parent=1 // pred_fallthru
      _
    %269 = vsyncpa [#allocation4], 1
    %270 = vsyncpa [#allocation6], 1

</llo_original>
